<compile_context>
chip_gen: v6e
topology: v6e:2x2x1
jax: 0.10.0
libtpu: 0.0.40
codegen_flags: <defaults>
</compile_context>

<pallas_src>
import jax
import jax.numpy as jnp
from jax.experimental import pallas as pl
from jax.experimental.pallas import tpu as pltpu


# ----------------------------------------------------------------------------
# Fused Pallas kernel (MLP in transposed layout + covariance epilogue)
# ----------------------------------------------------------------------------
def _make_fused_kernel(n_evidence, n_hidden):
    """Kernel factory for `n_evidence` evidence inputs and `n_hidden` hidden layers.

    Ref order:
      ev_0..ev_{n-1}            (d_k, TILE_B)  transposed evidence tiles
      w1_0..w1_{n-1}            (H, d_k)       first-layer weight split per evidence
      b1                        (H, 1)
      [w_i, b_i] * (n_hidden-1)
      w_out (D, H), b_out (D, 1), cov_param (D, D)
      mean_out (D, TILE_B), cov_out (D, D)
    """

    def kernel(*refs):
        ev_refs = refs[:n_evidence]
        w1_refs = refs[n_evidence:2 * n_evidence]
        idx = 2 * n_evidence
        b1_ref = refs[idx]
        idx += 1
        hidden_rest = []
        for _ in range(n_hidden - 1):
            hidden_rest.append((refs[idx], refs[idx + 1]))
            idx += 2
        wo_ref, bo_ref, covp_ref, mean_ref, cov_ref = refs[idx:idx + 5]

        # --- hidden layer 1: concat(evidence) folded into split weights -------
        h = jnp.dot(w1_refs[0][...], ev_refs[0][...],
                    preferred_element_type=jnp.float32)
        for k in range(1, n_evidence):
            h = h + jnp.dot(w1_refs[k][...], ev_refs[k][...],
                            preferred_element_type=jnp.float32)
        h = jnp.maximum(h + b1_ref[...], 0.0)                       # relu

        # --- remaining hidden layers ------------------------------------------
        for w_ref, b_ref in hidden_rest:
            h = jnp.dot(w_ref[...], h, preferred_element_type=jnp.float32)
            h = jnp.maximum(h + b_ref[...], 0.0)                    # relu

        # --- output layer: transposed mean (D, TILE_B) -> lane-dense store ----
        mean_ref[...] = (jnp.dot(wo_ref[...], h,
                                 preferred_element_type=jnp.float32)
                         + bo_ref[...]).astype(mean_ref.dtype)

        # --- covariance epilogue: batch-independent, computed once ------------
        @pl.when(pl.program_id(0) == 0)
        def _():
            n = covp_ref.shape[0]
            row = jax.lax.broadcasted_iota(jnp.int32, (n, n), 0)
            col = jax.lax.broadcasted_iota(jnp.int32, (n, n), 1)
            L = jnp.where(col <= row, covp_ref[...], 0.0)           # tril
            llt = jax.lax.dot_general(                              # L @ L.T
                L, L, dimension_numbers=(((1,), (1,)), ((), ())),
                preferred_element_type=jnp.float32)
            eye_eps = jnp.where(row == col, jnp.float32(1e-8), jnp.float32(0.0))
            cov_ref[...] = jnp.maximum(llt + eye_eps, 0.0).astype(cov_ref.dtype)

    return kernel


# ----------------------------------------------------------------------------
# Wrapper
# ----------------------------------------------------------------------------
def neural_net_gaussian_conditional_forward(evidence, params, *, tile_b=2048):
    """Returns (mean, cov) — the contents of the GaussianDistribution object."""
    ev_dims = [int(e.shape[1]) for e in evidence]
    B = int(evidence[0].shape[0])
    hidden_ws = params["hidden_w"]          # list of (H, in) PyTorch-layout weights
    hidden_bs = params["hidden_b"]          # list of (H,)
    wo, bo, covp = params["wo"], params["bo"], params["cov"]
    n_ev = len(evidence)
    n_hidden = len(hidden_ws)
    H = int(hidden_ws[0].shape[0])
    D = int(wo.shape[0])
    in_dim = sum(ev_dims)

    # Transposed (feature-major) evidence: batch on the 128-lane axis.
    ev_t = [jnp.asarray(e, jnp.float32).T for e in evidence]        # (d_k, B)

    # Split W1 per evidence source so the concat is folded into the kernel.
    offs = [0]
    for d in ev_dims:
        offs.append(offs[-1] + d)
    w1_splits = [jnp.asarray(hidden_ws[0][:, offs[k]:offs[k + 1]], jnp.float32)
                 for k in range(n_ev)]
    b_cols = [jnp.asarray(b, jnp.float32).reshape(-1, 1) for b in hidden_bs]
    bo_col = jnp.asarray(bo, jnp.float32).reshape(-1, 1)
    wo_f = jnp.asarray(wo, jnp.float32)
    covp_f = jnp.asarray(covp, jnp.float32)

    # Batch tiling: TILE_B must be a multiple of 128 (or equal B for small B).
    if B <= tile_b:
        tb, nb = B, 1
    else:
        tb, nb = tile_b, pl.cdiv(B, tile_b)

    def const_map(i):
        return (0, 0)

    ev_specs = [pl.BlockSpec((d, tb), lambda i: (0, i)) for d in ev_dims]
    in_specs = list(ev_specs)
    in_specs += [pl.BlockSpec(w.shape, const_map) for w in w1_splits]
    in_specs += [pl.BlockSpec(b_cols[0].shape, const_map)]

    extra_inputs = []
    for li in range(1, n_hidden):
        w_li = jnp.asarray(hidden_ws[li], jnp.float32)
        in_specs += [pl.BlockSpec(w_li.shape, const_map),
                     pl.BlockSpec(b_cols[li].shape, const_map)]
        extra_inputs += [w_li, b_cols[li]]

    in_specs += [pl.BlockSpec(wo_f.shape, const_map),
                 pl.BlockSpec(bo_col.shape, const_map),
                 pl.BlockSpec(covp_f.shape, const_map)]

    out_specs = [pl.BlockSpec((D, tb), lambda i: (0, i)),
                 pl.BlockSpec((D, D), const_map)]
    out_shape = (jax.ShapeDtypeStruct((D, B), jnp.float32),
                 jax.ShapeDtypeStruct((D, D), jnp.float32))

    flops = 2 * B * (in_dim * H + (n_hidden - 1) * H * H + H * D) + 2 * D * D * D
    bytes_accessed = 4 * (B * in_dim + B * D                # activations in/out
                          + in_dim * H + (n_hidden - 1) * H * H + H * D
                          + n_hidden * H + D + 2 * D * D)   # params + cov

    mean_t, cov = pl.pallas_call(
        _make_fused_kernel(n_ev, n_hidden),
        out_shape=out_shape,
        grid_spec=pltpu.PrefetchScalarGridSpec(
            num_scalar_prefetch=0,
            grid=(nb,),
            in_specs=in_specs,
            out_specs=out_specs,
        ),
        compiler_params=pltpu.CompilerParams(
            # The cov output block is grid-invariant (written once at step 0), so
            # the batch axis must stay "arbitrary".  TODO(synk): if cov is hoisted
            # to its own cached call, flip to ("parallel",) for v7x's 2 TCs.
            dimension_semantics=("arbitrary",),
            vmem_limit_bytes=32 * 1024 * 1024,
        ),
        cost_estimate=pl.CostEstimate(
            flops=flops, transcendentals=0, bytes_accessed=bytes_accessed),
    )(*ev_t, *w1_splits, b_cols[0], *extra_inputs, wo_f, bo_col, covp_f)

    return mean_t.T, cov            # user-facing mean is (B, data_dim)


# ----------------------------------------------------------------------------
# Parameter init (PyTorch nn.Linear layout: weight = (out, in), bias = (out,))
# ----------------------------------------------------------------------------
def init_params(key, evidence_dims, data_dim, hidden_layers=2, layer_size=32):
    input_dim = sum(evidence_dims)
    keys = jax.random.split(key, 2 * hidden_layers + 2)
    ws, bs = [], []
    d = input_dim
    for i in range(hidden_layers):
        ws.append(jax.random.normal(keys[2 * i], (layer_size, d), jnp.float32) * 0.1)
        bs.append(jax.random.normal(keys[2 * i + 1], (layer_size,), jnp.float32) * 0.01)
        d = layer_size
    wo = jax.random.normal(keys[-2], (data_dim, layer_size), jnp.float32) * 0.1
    bo = jax.random.normal(keys[-1], (data_dim,), jnp.float32) * 0.01
    return {"hidden_w": ws, "hidden_b": bs, "wo": wo, "bo": bo,
            "cov": jnp.eye(data_dim, dtype=jnp.float32)}   # same init as PyTorch module


# ----------------------------------------------------------------------------
# Reference (plain JAX) for sanity checks
# ----------------------------------------------------------------------------
def reference_forward(evidence, params):
    x = jnp.concatenate(evidence, axis=1).astype(jnp.float32)
    h = x
    for w, b in zip(params["hidden_w"], params["hidden_b"]):
        h = jnp.maximum(h @ w.T + b, 0.0)
    mean = h @ params["wo"].T + params["bo"]
    L = jnp.tril(params["cov"])
    cov = jnp.clip(L @ L.T + 1e-8 * jnp.eye(L.shape[0], dtype=jnp.float32), 0.0, None)
    return mean, cov


if __name__ == "__main__":
    key = jax.random.PRNGKey(0)
    evidence_dims = [3, 5]          # sum = 8 input features
    data_dim = 4
    batch = 8

    k_p, k_e1, k_e2, k_f1, k_f2 = jax.random.split(key, 5)
    params = init_params(k_p, evidence_dims, data_dim)

    # --- small-shape check (single tile) ------------------------------------
    evidence = [
        jax.random.normal(k_e1, (batch, evidence_dims[0]), jnp.float32),
        jax.random.normal(k_e2, (batch, evidence_dims[1]), jnp.float32),
    ]
    mean, cov = neural_net_gaussian_conditional_forward(evidence, params)
    jax.block_until_ready(mean)
    jax.block_until_ready(cov)
    ref_mean, ref_cov = reference_forward(evidence, params)
    assert mean.shape == (batch, data_dim) and cov.shape == (data_dim, data_dim)
    assert jnp.allclose(mean, ref_mean, atol=1e-5, rtol=1e-5)
    assert jnp.allclose(cov, ref_cov, atol=1e-6, rtol=1e-6)

    # --- exercise the gridded path (multiple batch tiles + partial tile) -----
    big_batch = 192                 # 2 tiles of 128 (last one partial)
    evidence_big = [
        jax.random.normal(k_f1, (big_batch, evidence_dims[0]), jnp.float32),
        jax.random.normal(k_f2, (big_batch, evidence_dims[1]), jnp.float32),
    ]
    mean_b, cov_b = neural_net_gaussian_conditional_forward(
        evidence_big, params, tile_b=128)
    jax.block_until_ready(mean_b)
    ref_mean_b, ref_cov_b = reference_forward(evidence_big, params)
    assert jnp.allclose(mean_b, ref_mean_b, atol=1e-5, rtol=1e-5)
    assert jnp.allclose(cov_b, ref_cov_b, atol=1e-6, rtol=1e-6)

    print("KERNEL_OK")
</pallas_src>

<mosaic_0001>
module attributes {stable_mosaic.version = 11 : i64} {
  func.func @kernel(%arg0: i32, %arg1: memref<3x8xf32, #tpu.memory_space<vmem>>, %arg2: memref<5x8xf32, #tpu.memory_space<vmem>>, %arg3: memref<32x3xf32, #tpu.memory_space<vmem>>, %arg4: memref<32x5xf32, #tpu.memory_space<vmem>>, %arg5: memref<32x1xf32, #tpu.memory_space<vmem>>, %arg6: memref<32x32xf32, #tpu.memory_space<vmem>>, %arg7: memref<32x1xf32, #tpu.memory_space<vmem>>, %arg8: memref<4x32xf32, #tpu.memory_space<vmem>>, %arg9: memref<4x1xf32, #tpu.memory_space<vmem>>, %arg10: memref<4x4xf32, #tpu.memory_space<vmem>>, %arg11: memref<4x8xf32, #tpu.memory_space<vmem>>, %arg12: memref<4x4xf32, #tpu.memory_space<vmem>>) attributes {dimension_semantics = [#tpu.dimension_semantics<arbitrary>], iteration_bounds = array<i64: 1>, scalar_prefetch = 0 : i64, scratch_operands = 0 : i64, tpu.core_type = #tpu.core_type<tc>, window_params = [{transform_indices = @transform_0, window_bounds = array<i64: 3, 8>}, {transform_indices = @transform_1, window_bounds = array<i64: 5, 8>}, {pipeline_mode = #tpu.pipeline_mode<synchronous>, transform_indices = @transform_2, window_bounds = array<i64: 32, 3>}, {pipeline_mode = #tpu.pipeline_mode<synchronous>, transform_indices = @transform_3, window_bounds = array<i64: 32, 5>}, {pipeline_mode = #tpu.pipeline_mode<synchronous>, transform_indices = @transform_4, window_bounds = array<i64: 32, 1>}, {pipeline_mode = #tpu.pipeline_mode<synchronous>, transform_indices = @transform_5, window_bounds = array<i64: 32, 32>}, {pipeline_mode = #tpu.pipeline_mode<synchronous>, transform_indices = @transform_6, window_bounds = array<i64: 32, 1>}, {pipeline_mode = #tpu.pipeline_mode<synchronous>, transform_indices = @transform_7, window_bounds = array<i64: 4, 32>}, {pipeline_mode = #tpu.pipeline_mode<synchronous>, transform_indices = @transform_8, window_bounds = array<i64: 4, 1>}, {pipeline_mode = #tpu.pipeline_mode<synchronous>, transform_indices = @transform_9, window_bounds = array<i64: 4, 4>}, {transform_indices = @transform_10, window_bounds = array<i64: 4, 8>}, {pipeline_mode = #tpu.pipeline_mode<synchronous>, transform_indices = @transform_11, window_bounds = array<i64: 4, 4>}]} {
    %c0 = arith.constant 0 : index
    %c0_0 = arith.constant 0 : index
    %0 = vector.load %arg3[%c0, %c0_0] : memref<32x3xf32, #tpu.memory_space<vmem>>, vector<32x3xf32>
    %c0_1 = arith.constant 0 : index
    %c0_2 = arith.constant 0 : index
    %1 = vector.load %arg1[%c0_1, %c0_2] : memref<3x8xf32, #tpu.memory_space<vmem>>, vector<3x8xf32>
    %cst = arith.constant dense<0.000000e+00> : vector<32x8xf32>
    %2 = tpu.matmul %0, %1, %cst {dimension_numbers = #tpu.dot_dimension_numbers<[1], [0], [0], [1], [0, 0, 1, 1], [], []>} : vector<32x3xf32>, vector<3x8xf32>, vector<32x8xf32> -> vector<32x8xf32>
    %c0_3 = arith.constant 0 : index
    %c0_4 = arith.constant 0 : index
    %3 = vector.load %arg4[%c0_3, %c0_4] : memref<32x5xf32, #tpu.memory_space<vmem>>, vector<32x5xf32>
    %c0_5 = arith.constant 0 : index
    %c0_6 = arith.constant 0 : index
    %4 = vector.load %arg2[%c0_5, %c0_6] : memref<5x8xf32, #tpu.memory_space<vmem>>, vector<5x8xf32>
    %cst_7 = arith.constant dense<0.000000e+00> : vector<32x8xf32>
    %5 = tpu.matmul %3, %4, %cst_7 {dimension_numbers = #tpu.dot_dimension_numbers<[1], [0], [0], [1], [0, 0, 1, 1], [], []>} : vector<32x5xf32>, vector<5x8xf32>, vector<32x8xf32> -> vector<32x8xf32>
    %6 = arith.addf %2, %5 : vector<32x8xf32>
    %c0_8 = arith.constant 0 : index
    %c0_9 = arith.constant 0 : index
    %7 = vector.load %arg5[%c0_8, %c0_9] : memref<32x1xf32, #tpu.memory_space<vmem>>, vector<32x1xf32>
    %8 = vector.broadcast %7 : vector<32x1xf32> to vector<32x8xf32>
    %9 = arith.addf %6, %8 : vector<32x8xf32>
    %cst_10 = arith.constant 0.000000e+00 : f32
    %10 = vector.broadcast %cst_10 : f32 to vector<32x8xf32>
    %11 = arith.maximumf %9, %10 : vector<32x8xf32>
    %c0_11 = arith.constant 0 : index
    %c0_12 = arith.constant 0 : index
    %12 = vector.load %arg6[%c0_11, %c0_12] : memref<32x32xf32, #tpu.memory_space<vmem>>, vector<32x32xf32>
    %cst_13 = arith.constant dense<0.000000e+00> : vector<32x8xf32>
    %13 = tpu.matmul %12, %11, %cst_13 {dimension_numbers = #tpu.dot_dimension_numbers<[1], [0], [0], [1], [0, 0, 1, 1], [], []>} : vector<32x32xf32>, vector<32x8xf32>, vector<32x8xf32> -> vector<32x8xf32>
    %c0_14 = arith.constant 0 : index
    %c0_15 = arith.constant 0 : index
    %14 = vector.load %arg7[%c0_14, %c0_15] : memref<32x1xf32, #tpu.memory_space<vmem>>, vector<32x1xf32>
    %15 = vector.broadcast %14 : vector<32x1xf32> to vector<32x8xf32>
    %16 = arith.addf %13, %15 : vector<32x8xf32>
    %cst_16 = arith.constant 0.000000e+00 : f32
    %17 = vector.broadcast %cst_16 : f32 to vector<32x8xf32>
    %18 = arith.maximumf %16, %17 : vector<32x8xf32>
    %c0_17 = arith.constant 0 : index
    %c0_18 = arith.constant 0 : index
    %19 = vector.load %arg8[%c0_17, %c0_18] : memref<4x32xf32, #tpu.memory_space<vmem>>, vector<4x32xf32>
    %cst_19 = arith.constant dense<0.000000e+00> : vector<4x8xf32>
    %20 = tpu.matmul %19, %18, %cst_19 {dimension_numbers = #tpu.dot_dimension_numbers<[1], [0], [0], [1], [0, 0, 1, 1], [], []>} : vector<4x32xf32>, vector<32x8xf32>, vector<4x8xf32> -> vector<4x8xf32>
    %c0_20 = arith.constant 0 : index
    %c0_21 = arith.constant 0 : index
    %21 = vector.load %arg9[%c0_20, %c0_21] : memref<4x1xf32, #tpu.memory_space<vmem>>, vector<4x1xf32>
    %22 = vector.broadcast %21 : vector<4x1xf32> to vector<4x8xf32>
    %23 = arith.addf %20, %22 : vector<4x8xf32>
    %c0_22 = arith.constant 0 : index
    %c0_23 = arith.constant 0 : index
    %24 = vector.load %arg11[%c0_22, %c0_23] : memref<4x8xf32, #tpu.memory_space<vmem>>, vector<4x8xf32>
    tpu.vector_store %arg11[%c0_22, %c0_23], %23 {strides = array<i32>} : memref<4x8xf32, #tpu.memory_space<vmem>>, vector<4x8xf32>,
    %c0_i32 = arith.constant 0 : i32
    %25 = arith.cmpi eq, %arg0, %c0_i32 : i32
    %26 = arith.extui %25 : i1 to i32
    %c0_i32_24 = arith.constant 0 : i32
    %27 = arith.cmpi ne, %26, %c0_i32_24 : i32
    scf.if %27 {
      %28 = tpu.iota {dimensions = array<i32: 0>} : vector<4x4xi32>
      %29 = tpu.iota {dimensions = array<i32: 1>} : vector<4x4xi32>
      %30 = arith.cmpi sle, %29, %28 : vector<4x4xi32>
      %c0_25 = arith.constant 0 : index
      %c0_26 = arith.constant 0 : index
      %31 = vector.load %arg10[%c0_25, %c0_26] : memref<4x4xf32, #tpu.memory_space<vmem>>, vector<4x4xf32>
      %cst_27 = arith.constant 0.000000e+00 : f32
      %32 = vector.broadcast %cst_27 : f32 to vector<4x4xf32>
      %33 = arith.select %30, %31, %32 : vector<4x4xi1>, vector<4x4xf32>
      %cst_28 = arith.constant dense<0.000000e+00> : vector<4x4xf32>
      %34 = tpu.matmul %33, %33, %cst_28 {dimension_numbers = #tpu.dot_dimension_numbers<[1], [1], [0], [0], [0, 0, 1, 0], [], []>} : vector<4x4xf32>, vector<4x4xf32>, vector<4x4xf32> -> vector<4x4xf32>
      %35 = arith.cmpi eq, %28, %29 : vector<4x4xi32>
      %cst_29 = arith.constant 9.99999993E-9 : f32
      %cst_30 = arith.constant 0.000000e+00 : f32
      %36 = vector.broadcast %cst_29 : f32 to vector<4x4xf32>
      %37 = vector.broadcast %cst_30 : f32 to vector<4x4xf32>
      %38 = arith.select %35, %36, %37 : vector<4x4xi1>, vector<4x4xf32>
      %39 = arith.addf %34, %38 : vector<4x4xf32>
      %cst_31 = arith.constant 0.000000e+00 : f32
      %40 = vector.broadcast %cst_31 : f32 to vector<4x4xf32>
      %41 = arith.maximumf %39, %40 : vector<4x4xf32>
      %c0_32 = arith.constant 0 : index
      %c0_33 = arith.constant 0 : index
      %42 = vector.load %arg12[%c0_32, %c0_33] : memref<4x4xf32, #tpu.memory_space<vmem>>, vector<4x4xf32>
      tpu.vector_store %arg12[%c0_32, %c0_33], %41 {strides = array<i32>} : memref<4x4xf32, #tpu.memory_space<vmem>>, vector<4x4xf32>,
    } else {
    }
    return
  }
  func.func @transform_0(%arg0: i32) -> (i32, i32) {
    %c0_i32 = arith.constant 0 : i32
    %c0_i32_0 = arith.constant 0 : i32
    return %c0_i32, %arg0 : i32, i32
  }
  func.func @transform_1(%arg0: i32) -> (i32, i32) {
    %c0_i32 = arith.constant 0 : i32
    %c0_i32_0 = arith.constant 0 : i32
    return %c0_i32, %arg0 : i32, i32
  }
  func.func @transform_2(%arg0: i32) -> (i32, i32) {
    %c0_i32 = arith.constant 0 : i32
    %c0_i32_0 = arith.constant 0 : i32
    %c0_i32_1 = arith.constant 0 : i32
    return %c0_i32, %c0_i32_0 : i32, i32
  }
  func.func @transform_3(%arg0: i32) -> (i32, i32) {
    %c0_i32 = arith.constant 0 : i32
    %c0_i32_0 = arith.constant 0 : i32
    %c0_i32_1 = arith.constant 0 : i32
    return %c0_i32, %c0_i32_0 : i32, i32
  }
  func.func @transform_4(%arg0: i32) -> (i32, i32) {
    %c0_i32 = arith.constant 0 : i32
    %c0_i32_0 = arith.constant 0 : i32
    %c0_i32_1 = arith.constant 0 : i32
    return %c0_i32, %c0_i32_0 : i32, i32
  }
  func.func @transform_5(%arg0: i32) -> (i32, i32) {
    %c0_i32 = arith.constant 0 : i32
    %c0_i32_0 = arith.constant 0 : i32
    %c0_i32_1 = arith.constant 0 : i32
    return %c0_i32, %c0_i32_0 : i32, i32
  }
  func.func @transform_6(%arg0: i32) -> (i32, i32) {
    %c0_i32 = arith.constant 0 : i32
    %c0_i32_0 = arith.constant 0 : i32
    %c0_i32_1 = arith.constant 0 : i32
    return %c0_i32, %c0_i32_0 : i32, i32
  }
  func.func @transform_7(%arg0: i32) -> (i32, i32) {
    %c0_i32 = arith.constant 0 : i32
    %c0_i32_0 = arith.constant 0 : i32
    %c0_i32_1 = arith.constant 0 : i32
    return %c0_i32, %c0_i32_0 : i32, i32
  }
  func.func @transform_8(%arg0: i32) -> (i32, i32) {
    %c0_i32 = arith.constant 0 : i32
    %c0_i32_0 = arith.constant 0 : i32
    %c0_i32_1 = arith.constant 0 : i32
    return %c0_i32, %c0_i32_0 : i32, i32
  }
  func.func @transform_9(%arg0: i32) -> (i32, i32) {
    %c0_i32 = arith.constant 0 : i32
    %c0_i32_0 = arith.constant 0 : i32
    %c0_i32_1 = arith.constant 0 : i32
    return %c0_i32, %c0_i32_0 : i32, i32
  }
  func.func @transform_10(%arg0: i32) -> (i32, i32) {
    %c0_i32 = arith.constant 0 : i32
    %c0_i32_0 = arith.constant 0 : i32
    return %c0_i32, %arg0 : i32, i32
  }
  func.func @transform_11(%arg0: i32) -> (i32, i32) {
    %c0_i32 = arith.constant 0 : i32
    %c0_i32_0 = arith.constant 0 : i32
    %c0_i32_1 = arith.constant 0 : i32
    return %c0_i32, %c0_i32_0 : i32, i32
  }
}

</mosaic_0001>

<llo_original>
// kernel: tpu_custom_call.1
$region0: #{tpu_custom_call.1}
  #allocation0 [shape = 'u32[]', space=smem, size = 0x4, offset = 0x4, fixed_abs, tag = 'smem constant byte address 0x4 - core index']
  #allocation1 [shape = 'u32[144,128]{1,0:T(1,128)}', space=vmem, size = 0x12000, scoped, tag = 'internal scratch']
  %s0 = inlined_call_operand.vmem [shape: f32[3,8], index: 0, kind: input, shape index: {}]
  %s1 = inlined_call_operand.vmem [shape: f32[5,8], index: 1, kind: input, shape index: {}]
  %s2 = inlined_call_operand.vmem [shape: f32[32,3], index: 2, kind: input, shape index: {}]
  %s3 = inlined_call_operand.vmem [shape: f32[32,5], index: 3, kind: input, shape index: {}]
  %s4 = inlined_call_operand.vmem [shape: f32[32,1], index: 4, kind: input, shape index: {}]
  %s5 = inlined_call_operand.vmem [shape: f32[32,32], index: 5, kind: input, shape index: {}]
  %s6 = inlined_call_operand.vmem [shape: f32[32,1], index: 6, kind: input, shape index: {}]
  %s7 = inlined_call_operand.vmem [shape: f32[4,32], index: 7, kind: input, shape index: {}]
  %s8 = inlined_call_operand.vmem [shape: f32[4,1], index: 8, kind: input, shape index: {}]
  %s9 = inlined_call_operand.vmem [shape: f32[4,4], index: 9, kind: input, shape index: {}]
  %s10 = inlined_call_operand.hbm [shape: f32[4,8], index: 10, kind: output, shape index: {0}]
  %s11 = inlined_call_operand.hbm [shape: f32[4,4], index: 11, kind: output, shape index: {1}]
  %12 = xla_tuple %s10, %s11
  %s13 = sld [smem:[#allocation0]]
  $region62: #{tpu_custom_call.1} parent=0
    _
  %s15 = ssub.s32 1, %s13
  %s16 = scalar_select 0, %s15, %s13
  $region1: #{tpu_custom_call.1} parent=0
    #allocation2 [shape = 'u8[2048]{0}', space=vmem, size = 0x800, scoped, tag = 'output window, operand 0, single buffered']
    #allocation3 [shape = 's32[1]{0}', space=sflag, size = 0x4, scoped, tag = 'scoped memory for tpu_custom_call.1']
    #allocation4 [shape = 'u8[2048]{0}', space=vmem, size = 0x800, scoped, tag = 'output window, operand 1, single buffered']
    #allocation5 [shape = 's32[1]{0}', space=sflag, size = 0x4, scoped, tag = 'scoped memory for tpu_custom_call.1']
    %17 = vsyncpa [#allocation3], 0
    %18 = vsyncpa [#allocation5], 0
    // Predicated region
    $region2: #{tpu_custom_call.1} parent=1 // pred_check
      _
    $region3: #{tpu_custom_call.1} parent=1 // pred_check_branch
      %20 = sbr.rel (0) target = $region5
    $region4: #{tpu_custom_call.1} parent=1 // pred_region
      _
    $region5: #{tpu_custom_call.1} parent=1 // pred_fallthru
      _
    // Predicated region
    $region6: #{tpu_custom_call.1} parent=1 // pred_check
      _
    $region7: #{tpu_custom_call.1} parent=1 // pred_check_branch
      %22 = sbr.rel (0) target = $region9
    $region8: #{tpu_custom_call.1} parent=1 // pred_region
      _
    $region9: #{tpu_custom_call.1} parent=1 // pred_fallthru
      _
    // Predicated region
    $region10: #{tpu_custom_call.1} parent=1 // pred_check
      _
    $region11: #{tpu_custom_call.1} parent=1 // pred_check_branch
      %24 = sbr.rel (0) target = $region13
    $region12: #{tpu_custom_call.1} parent=1 // pred_region
      _
    $region13: #{tpu_custom_call.1} parent=1 // pred_fallthru
      _
    // Predicated region
    $region14: #{tpu_custom_call.1} parent=1 // pred_check
      _
    $region15: #{tpu_custom_call.1} parent=1 // pred_check_branch
      %26 = sbr.rel (0) target = $region17
    $region16: #{tpu_custom_call.1} parent=1 // pred_region
      _
    $region17: #{tpu_custom_call.1} parent=1 // pred_fallthru
      _
    // Predicated region
    $region18: #{tpu_custom_call.1} parent=1 // pred_check
      _
    $region19: #{tpu_custom_call.1} parent=1 // pred_check_branch
      %28 = sbr.rel (0) target = $region21
    $region20: #{tpu_custom_call.1} parent=1 // pred_region
      _
    $region21: #{tpu_custom_call.1} parent=1 // pred_fallthru
      _
    // Predicated region
    $region22: #{tpu_custom_call.1} parent=1 // pred_check
      _
    $region23: #{tpu_custom_call.1} parent=1 // pred_check_branch
      %30 = sbr.rel (0) target = $region25
    $region24: #{tpu_custom_call.1} parent=1 // pred_region
      _
    $region25: #{tpu_custom_call.1} parent=1 // pred_fallthru
      _
    // Predicated region
    $region26: #{tpu_custom_call.1} parent=1 // pred_check
      _
    $region27: #{tpu_custom_call.1} parent=1 // pred_check_branch
      %32 = sbr.rel (0) target = $region29
    $region28: #{tpu_custom_call.1} parent=1 // pred_region
      _
    $region29: #{tpu_custom_call.1} parent=1 // pred_fallthru
      _
    // Predicated region
    $region30: #{tpu_custom_call.1} parent=1 // pred_check
      _
    $region31: #{tpu_custom_call.1} parent=1 // pred_check_branch
      %34 = sbr.rel (0) target = $region33
    $region32: #{tpu_custom_call.1} parent=1 // pred_region
      _
    $region33: #{tpu_custom_call.1} parent=1 // pred_fallthru
      _
    // Predicated region
    $region34: #{tpu_custom_call.1} parent=1 // pred_check
      _
    $region35: #{tpu_custom_call.1} parent=1 // pred_check_branch
      %36 = sbr.rel (0) target = $region37
    $region36: #{tpu_custom_call.1} parent=1 // pred_region
      _
    $region37: #{tpu_custom_call.1} parent=1 // pred_fallthru
      _
    // Predicated region
    $region38: #{tpu_custom_call.1} parent=1 // pred_check
      _
    $region39: #{tpu_custom_call.1} parent=1 // pred_check_branch
      %38 = sbr.rel (0) target = $region41
    $region40: #{tpu_custom_call.1} parent=1 // pred_region
      _
    $region41: #{tpu_custom_call.1} parent=1 // pred_fallthru
      _
    %v39 = vld [vmem:[%s2] sm:$0xff]
    %v40 = vld [vmem:[%s2 + $0x8] sm:$0xff]
    %v41 = vld [vmem:[%s2 + $0x10] sm:$0xff]
    %v42 = vld [vmem:[%s2 + $0x18] sm:$0xff]
    %v43 = vld [vmem:[%s0] sm:$0x7]
    %v44 = vld [vmem:[%s3] sm:$0xff]
    %v45 = vld [vmem:[%s3 + $0x8] sm:$0xff]
    %v46 = vld [vmem:[%s3 + $0x10] sm:$0xff]
    %v47 = vld [vmem:[%s3 + $0x18] sm:$0xff]
    %v48 = vld [vmem:[%s1] sm:$0x1f]
    %vm49 = vcmask 39936
    %v51 = vsel %vm49, %v44, 0
    %v54 = vsel %vm49, %v45, 0
    %v57 = vsel %vm49, %v46, 0
    %v60 = vsel %vm49, %v47, 0
    %vm62 = vcmask 1044480
    %v64 = vsel %vm62, %v48, 0
    %66 = vmatprep.subr.mxu0 0.0
    %67 = vmatpush1.msra.mxu0 0.0
    %68 = vmatprep.subr.mxu0 0.0
    %69 = vmatpush1.msra.mxu0 0.0
    %70 = vmatprep.subr.mxu0 0.0
    %71 = vmatpush1.msra.mxu0 0.0
    %72 = vmatprep.subr.mxu0 0.0
    %73 = vmatpush1.msra.mxu0 0.0
    %74 = vmatprep.subr.mxu0 0.0
    %75 = vmatpush1.msra.mxu0 0.0
    %76 = vmatprep.subr.mxu0 0.0
    %77 = vmatpush1.msra.mxu0 0.0
    %78 = vmatprep.subr.mxu0 0.0
    %79 = vmatpush1.msra.mxu0 0.0
    %80 = vmatprep.subr.mxu0 0.0
    %81 = vmatpush1.msra.mxu0 0.0
    %82 = vmatprep.subr.mxu0 0.0
    %83 = vmatpush1.msra.mxu0 0.0
    %84 = vmatprep.subr.mxu0 0.0
    %85 = vmatpush1.msra.mxu0 0.0
    %86 = vmatprep.subr.mxu0 0.0
    %87 = vmatpush1.msra.mxu0 0.0
    %88 = vmatprep.subr.mxu0 0.0
    %89 = vmatpush1.msra.mxu0 0.0
    %90 = vmatprep.subr.mxu0 0.0
    %91 = vmatpush1.msra.mxu0 0.0
    %92 = vmatprep.subr.mxu0 0.0
    %93 = vmatpush1.msra.mxu0 0.0
    %94 = vmatprep.subr.mxu0 0.0
    %95 = vmatpush1.msra.mxu0 0.0
    %96 = vmatprep.subr.mxu0 0.0
    %97 = vmatpush1.msra.mxu0 %v64
    %98 = vmatprep.subr.mxu0 0.0
    %99 = vmatpush2.msra.mxu0 0.0
    %100 = vmatprep.subr.mxu0 0.0
    %101 = vmatpush2.msra.mxu0 0.0
    %102 = vmatprep.subr.mxu0 0.0
    %103 = vmatpush2.msra.mxu0 0.0
    %104 = vmatprep.subr.mxu0 0.0
    %105 = vmatpush2.msra.mxu0 0.0
    %106 = vmatprep.subr.mxu0 0.0
    %107 = vmatpush2.msra.mxu0 0.0
    %108 = vmatprep.subr.mxu0 0.0
    %109 = vmatpush2.msra.mxu0 0.0
    %110 = vmatprep.subr.mxu0 0.0
    %111 = vmatpush2.msra.mxu0 0.0
    %112 = vmatprep.subr.mxu0 0.0
    %113 = vmatpush2.msra.mxu0 0.0
    %114 = vmatprep.subr.mxu0 0.0
    %115 = vmatpush2.msra.mxu0 0.0
    %116 = vmatprep.subr.mxu0 0.0
    %117 = vmatpush2.msra.mxu0 0.0
    %118 = vmatprep.subr.mxu0 0.0
    %119 = vmatpush2.msra.mxu0 0.0
    %120 = vmatprep.subr.mxu0 0.0
    %121 = vmatpush2.msra.mxu0 0.0
    %122 = vmatprep.subr.mxu0 0.0
    %123 = vmatpush2.msra.mxu0 0.0
    %124 = vmatprep.subr.mxu0 0.0
    %125 = vmatpush2.msra.mxu0 0.0
    %126 = vmatprep.subr.mxu0 0.0
    %127 = vmatpush2.msra.mxu0 0.0
    %128 = vmatprep.subr.mxu0 0.0
    %129 = vmatpush2.msra.mxu0 0.0
    %130 = vmatprep.mubr.f32.mxu0 0.0
    %131 = vmatmul.mubr.f32.gmra.mxu0 %v51
    %v132 = vpop.f32.mrf.mxu0
    %v133 = vadd.f32 0.0, %v132
    %v134 = vpop.f32.mrf.mxu0
    %135 = vmatprep.mubr.f32.mxu0 0.0
    %136 = vmatmul.mubr.f32.gmra.mxu0 %v54
    %v137 = vpop.f32.mrf.mxu0
    %v138 = vadd.f32 0.0, %v137
    %v139 = vpop.f32.mrf.mxu0
    %140 = vmatprep.mubr.f32.mxu0 0.0
    %141 = vmatmul.mubr.f32.gmra.mxu0 %v57
    %v142 = vpop.f32.mrf.mxu0
    %v143 = vadd.f32 0.0, %v142
    %v144 = vpop.f32.mrf.mxu0
    %145 = vmatprep.mubr.f32.mxu0 0.0
    %146 = vmatmul.mubr.f32.gmra.mxu0 %v60
    %v147 = vpop.f32.mrf.mxu0
    %v148 = vadd.f32 0.0, %v147
    %v149 = vpop.f32.mrf.mxu0
    %150 = vdwg.mxu0
    %vm151 = vcmask 23552
    %v153 = vsel %vm151, %v39, 0
    %v156 = vsel %vm151, %v40, 0
    %v159 = vsel %vm151, %v41, 0
    %v162 = vsel %vm151, %v42, 0
    %vm164 = vcmask 1042432
    %v166 = vsel %vm164, %v43, 0
    %168 = vmatprep.subr.mxu0 0.0
    %169 = vmatpush1.msra.mxu0 0.0
    %170 = vmatprep.subr.mxu0 0.0
    %171 = vmatpush1.msra.mxu0 0.0
    %172 = vmatprep.subr.mxu0 0.0
    %173 = vmatpush1.msra.mxu0 0.0
    %174 = vmatprep.subr.mxu0 0.0
    %175 = vmatpush1.msra.mxu0 0.0
    %176 = vmatprep.subr.mxu0 0.0
    %177 = vmatpush1.msra.mxu0 0.0
    %178 = vmatprep.subr.mxu0 0.0
    %179 = vmatpush1.msra.mxu0 0.0
    %180 = vmatprep.subr.mxu0 0.0
    %181 = vmatpush1.msra.mxu0 0.0
    %182 = vmatprep.subr.mxu0 0.0
    %183 = vmatpush1.msra.mxu0 0.0
    %184 = vmatprep.subr.mxu0 0.0
    %185 = vmatpush1.msra.mxu0 0.0
    %186 = vmatprep.subr.mxu0 0.0
    %187 = vmatpush1.msra.mxu0 0.0
    %188 = vmatprep.subr.mxu0 0.0
    %189 = vmatpush1.msra.mxu0 0.0
    %190 = vmatprep.subr.mxu0 0.0
    %191 = vmatpush1.msra.mxu0 0.0
    %192 = vmatprep.subr.mxu0 0.0
    %193 = vmatpush1.msra.mxu0 0.0
    %194 = vmatprep.subr.mxu0 0.0
    %195 = vmatpush1.msra.mxu0 0.0
    %196 = vmatprep.subr.mxu0 0.0
    %197 = vmatpush1.msra.mxu0 0.0
    %198 = vmatprep.subr.mxu0 0.0
    %199 = vmatpush1.msra.mxu0 %v166
    %200 = vmatprep.subr.mxu0 0.0
    %201 = vmatpush2.msra.mxu0 0.0
    %202 = vmatprep.subr.mxu0 0.0
    %203 = vmatpush2.msra.mxu0 0.0
    %204 = vmatprep.subr.mxu0 0.0
    %205 = vmatpush2.msra.mxu0 0.0
    %206 = vmatprep.subr.mxu0 0.0
    %207 = vmatpush2.msra.mxu0 0.0
    %208 = vmatprep.subr.mxu0 0.0
    %209 = vmatpush2.msra.mxu0 0.0
    %210 = vmatprep.subr.mxu0 0.0
    %211 = vmatpush2.msra.mxu0 0.0
    %212 = vmatprep.subr.mxu0 0.0
    %213 = vmatpush2.msra.mxu0 0.0
    %214 = vmatprep.subr.mxu0 0.0
    %215 = vmatpush2.msra.mxu0 0.0
    %216 = vmatprep.subr.mxu0 0.0
    %217 = vmatpush2.msra.mxu0 0.0
    %218 = vmatprep.subr.mxu0 0.0
    %219 = vmatpush2.msra.mxu0 0.0
    %220 = vmatprep.subr.mxu0 0.0
    %221 = vmatpush2.msra.mxu0 0.0
    %222 = vmatprep.subr.mxu0 0.0
    %223 = vmatpush2.msra.mxu0 0.0
    %224 = vmatprep.subr.mxu0 0.0
    %225 = vmatpush2.msra.mxu0 0.0
    %226 = vmatprep.subr.mxu0 0.0
    %227 = vmatpush2.msra.mxu0 0.0
    %228 = vmatprep.subr.mxu0 0.0
    %229 = vmatpush2.msra.mxu0 0.0
    %230 = vmatprep.subr.mxu0 0.0
    %231 = vmatpush2.msra.mxu0 0.0
    %232 = vmatprep.mubr.f32.mxu0 0.0
    %233 = vmatmul.mubr.f32.gmra.mxu0 %v153
    %v234 = vpop.f32.mrf.mxu0
    %v235 = vadd.f32 %v133, %v234
    %v236 = vpop.f32.mrf.mxu0
    %237 = vmatprep.mubr.f32.mxu0 0.0
    %238 = vmatmul.mubr.f32.gmra.mxu0 %v156
    %v239 = vpop.f32.mrf.mxu0
    %v240 = vadd.f32 %v138, %v239
    %v241 = vpop.f32.mrf.mxu0
    %242 = vmatprep.mubr.f32.mxu0 0.0
    %243 = vmatmul.mubr.f32.gmra.mxu0 %v159
    %v244 = vpop.f32.mrf.mxu0
    %v245 = vadd.f32 %v143, %v244
    %v246 = vpop.f32.mrf.mxu0
    %247 = vmatprep.mubr.f32.mxu0 0.0
    %248 = vmatmul.mubr.f32.gmra.mxu0 %v162
    %v249 = vpop.f32.mrf.mxu0
    %v250 = vadd.f32 %v148, %v249
    %v251 = vpop.f32.mrf.mxu0
    %252 = vdwg.mxu0
    %v253 = vld [vmem:[%s4] sm:$0xff]
    %v254 = vld [vmem:[%s4 + $0x8] sm:$0xff]
    %v255 = vld [vmem:[%s4 + $0x10] sm:$0xff]
    %v256 = vld [vmem:[%s4 + $0x18] sm:$0xff]
    %258 = vset.pattern.permute.xlu0 0
    %259 = vperm.xlu0 %258, %v253
    %v260 = vpop.permute.xlu0 %259
    %263 = vset.pattern.permute.xlu0 0
    %264 = vperm.xlu0 %263, %v254
    %v265 = vpop.permute.xlu0 %264
    %268 = vset.pattern.permute.xlu0 0
    %269 = vperm.xlu0 %268, %v255
    %v270 = vpop.permute.xlu0 %269
    %273 = vset.pattern.permute.xlu0 0
    %274 = vperm.xlu0 %273, %v256
    %v275 = vpop.permute.xlu0 %274
    %v277 = vadd.f32 %v235, %v260
    %v278 = vadd.f32 %v240, %v265
    %v279 = vadd.f32 %v245, %v270
    %v280 = vadd.f32 %v250, %v275
    %v281 = vmax.f32 %v277, 0.0
    %v282 = vmax.f32 %v278, 0.0
    %v283 = vmax.f32 %v279, 0.0
    %v284 = vmax.f32 %v280, 0.0
    %v285 = vld [vmem:[%s5] sm:$0xff]
    %v286 = vld [vmem:[%s5 + $0x8] sm:$0xff]
    %v287 = vld [vmem:[%s5 + $0x10] sm:$0xff]
    %v288 = vld [vmem:[%s5 + $0x18] sm:$0xff]
    %v289 = vld [vmem:[%s6] sm:$0xff]
    %v290 = vld [vmem:[%s6 + $0x8] sm:$0xff]
    %v291 = vld [vmem:[%s6 + $0x10] sm:$0xff]
    %v292 = vld [vmem:[%s6 + $0x18] sm:$0xff]
    %294 = vset.pattern.permute.xlu0 0
    %295 = vperm.xlu0 %294, %v289
    %v296 = vpop.permute.xlu0 %295
    %299 = vset.pattern.permute.xlu0 0
    %300 = vperm.xlu0 %299, %v290
    %v301 = vpop.permute.xlu0 %300
    %304 = vset.pattern.permute.xlu0 0
    %305 = vperm.xlu0 %304, %v291
    %v306 = vpop.permute.xlu0 %305
    %309 = vset.pattern.permute.xlu0 0
    %310 = vperm.xlu0 %309, %v292
    %v311 = vpop.permute.xlu0 %310
    %vm313 = vcmask 261120
    %v315 = vsel %vm313, %v285, 0
    %v318 = vsel %vm313, %v286, 0
    %v321 = vsel %vm313, %v287, 0
    %v324 = vsel %vm313, %v288, 0
    %326 = vmatprep.subr.mxu0 0.0
    %327 = vmatpush1.msra.mxu0 0.0
    %328 = vmatprep.subr.mxu0 0.0
    %329 = vmatpush1.msra.mxu0 0.0
    %330 = vmatprep.subr.mxu0 0.0
    %331 = vmatpush1.msra.mxu0 0.0
    %332 = vmatprep.subr.mxu0 0.0
    %333 = vmatpush1.msra.mxu0 0.0
    %334 = vmatprep.subr.mxu0 0.0
    %335 = vmatpush1.msra.mxu0 0.0
    %336 = vmatprep.subr.mxu0 0.0
    %337 = vmatpush1.msra.mxu0 0.0
    %338 = vmatprep.subr.mxu0 0.0
    %339 = vmatpush1.msra.mxu0 0.0
    %340 = vmatprep.subr.mxu0 0.0
    %341 = vmatpush1.msra.mxu0 0.0
    %342 = vmatprep.subr.mxu0 0.0
    %343 = vmatpush1.msra.mxu0 0.0
    %344 = vmatprep.subr.mxu0 0.0
    %345 = vmatpush1.msra.mxu0 0.0
    %346 = vmatprep.subr.mxu0 0.0
    %347 = vmatpush1.msra.mxu0 0.0
    %348 = vmatprep.subr.mxu0 0.0
    %349 = vmatpush1.msra.mxu0 0.0
    %350 = vmatprep.subr.mxu0 0.0
    %351 = vmatpush1.msra.mxu0 %v284
    %352 = vmatprep.subr.mxu0 0.0
    %353 = vmatpush1.msra.mxu0 %v283
    %354 = vmatprep.subr.mxu0 0.0
    %355 = vmatpush1.msra.mxu0 %v282
    %356 = vmatprep.subr.mxu0 0.0
    %357 = vmatpush1.msra.mxu0 %v281
    %358 = vmatprep.subr.mxu0 0.0
    %359 = vmatpush2.msra.mxu0 0.0
    %360 = vmatprep.subr.mxu0 0.0
    %361 = vmatpush2.msra.mxu0 0.0
    %362 = vmatprep.subr.mxu0 0.0
    %363 = vmatpush2.msra.mxu0 0.0
    %364 = vmatprep.subr.mxu0 0.0
    %365 = vmatpush2.msra.mxu0 0.0
    %366 = vmatprep.subr.mxu0 0.0
    %367 = vmatpush2.msra.mxu0 0.0
    %368 = vmatprep.subr.mxu0 0.0
    %369 = vmatpush2.msra.mxu0 0.0
    %370 = vmatprep.subr.mxu0 0.0
    %371 = vmatpush2.msra.mxu0 0.0
    %372 = vmatprep.subr.mxu0 0.0
    %373 = vmatpush2.msra.mxu0 0.0
    %374 = vmatprep.subr.mxu0 0.0
    %375 = vmatpush2.msra.mxu0 0.0
    %376 = vmatprep.subr.mxu0 0.0
    %377 = vmatpush2.msra.mxu0 0.0
    %378 = vmatprep.subr.mxu0 0.0
    %379 = vmatpush2.msra.mxu0 0.0
    %380 = vmatprep.subr.mxu0 0.0
    %381 = vmatpush2.msra.mxu0 0.0
    %382 = vmatprep.subr.mxu0 0.0
    %383 = vmatpush2.msra.mxu0 0.0
    %384 = vmatprep.subr.mxu0 0.0
    %385 = vmatpush2.msra.mxu0 0.0
    %386 = vmatprep.subr.mxu0 0.0
    %387 = vmatpush2.msra.mxu0 0.0
    %388 = vmatprep.subr.mxu0 0.0
    %389 = vmatpush2.msra.mxu0 0.0
    %390 = vmatprep.mubr.f32.mxu0 0.0
    %391 = vmatmul.mubr.f32.gmra.mxu0 %v315
    %v392 = vpop.f32.mrf.mxu0
    %v393 = vadd.f32 %v296, %v392
    %v394 = vpop.f32.mrf.mxu0
    %395 = vmatprep.mubr.f32.mxu0 0.0
    %396 = vmatmul.mubr.f32.gmra.mxu0 %v318
    %v397 = vpop.f32.mrf.mxu0
    %v398 = vadd.f32 %v301, %v397
    %v399 = vpop.f32.mrf.mxu0
    %400 = vmatprep.mubr.f32.mxu0 0.0
    %401 = vmatmul.mubr.f32.gmra.mxu0 %v321
    %v402 = vpop.f32.mrf.mxu0
    %v403 = vadd.f32 %v306, %v402
    %v404 = vpop.f32.mrf.mxu0
    %405 = vmatprep.mubr.f32.mxu0 0.0
    %406 = vmatmul.mubr.f32.gmra.mxu0 %v324
    %v407 = vpop.f32.mrf.mxu0
    %v408 = vadd.f32 %v311, %v407
    %v409 = vpop.f32.mrf.mxu0
    %410 = vdwg.mxu0
    %v411 = vmax.f32 %v393, 0.0
    %v412 = vmax.f32 %v398, 0.0
    %v413 = vmax.f32 %v403, 0.0
    %v414 = vmax.f32 %v408, 0.0
    %v415 = vld [vmem:[%s7] sm:$0xf]
    %v416 = vld [vmem:[%s8] sm:$0xf]
    %418 = vset.pattern.permute.xlu0 0
    %419 = vperm.xlu0 %418, %v416
    %v420 = vpop.permute.xlu0 %419
    %v423 = vsel %vm313, %v415, 0
    %425 = vmatprep.subr.mxu0 0.0
    %426 = vmatpush1.msra.mxu0 0.0
    %427 = vmatprep.subr.mxu0 0.0
    %428 = vmatpush1.msra.mxu0 0.0
    %429 = vmatprep.subr.mxu0 0.0
    %430 = vmatpush1.msra.mxu0 0.0
    %431 = vmatprep.subr.mxu0 0.0
    %432 = vmatpush1.msra.mxu0 0.0
    %433 = vmatprep.subr.mxu0 0.0
    %434 = vmatpush1.msra.mxu0 0.0
    %435 = vmatprep.subr.mxu0 0.0
    %436 = vmatpush1.msra.mxu0 0.0
    %437 = vmatprep.subr.mxu0 0.0
    %438 = vmatpush1.msra.mxu0 0.0
    %439 = vmatprep.subr.mxu0 0.0
    %440 = vmatpush1.msra.mxu0 0.0
    %441 = vmatprep.subr.mxu0 0.0
    %442 = vmatpush1.msra.mxu0 0.0
    %443 = vmatprep.subr.mxu0 0.0
    %444 = vmatpush1.msra.mxu0 0.0
    %445 = vmatprep.subr.mxu0 0.0
    %446 = vmatpush1.msra.mxu0 0.0
    %447 = vmatprep.subr.mxu0 0.0
    %448 = vmatpush1.msra.mxu0 0.0
    %449 = vmatprep.subr.mxu0 0.0
    %450 = vmatpush1.msra.mxu0 %v414
    %451 = vmatprep.subr.mxu0 0.0
    %452 = vmatpush1.msra.mxu0 %v413
    %453 = vmatprep.subr.mxu0 0.0
    %454 = vmatpush1.msra.mxu0 %v412
    %455 = vmatprep.subr.mxu0 0.0
    %456 = vmatpush1.msra.mxu0 %v411
    %457 = vmatprep.subr.mxu0 0.0
    %458 = vmatpush2.msra.mxu0 0.0
    %459 = vmatprep.subr.mxu0 0.0
    %460 = vmatpush2.msra.mxu0 0.0
    %461 = vmatprep.subr.mxu0 0.0
    %462 = vmatpush2.msra.mxu0 0.0
    %463 = vmatprep.subr.mxu0 0.0
    %464 = vmatpush2.msra.mxu0 0.0
    %465 = vmatprep.subr.mxu0 0.0
    %466 = vmatpush2.msra.mxu0 0.0
    %467 = vmatprep.subr.mxu0 0.0
    %468 = vmatpush2.msra.mxu0 0.0
    %469 = vmatprep.subr.mxu0 0.0
    %470 = vmatpush2.msra.mxu0 0.0
    %471 = vmatprep.subr.mxu0 0.0
    %472 = vmatpush2.msra.mxu0 0.0
    %473 = vmatprep.subr.mxu0 0.0
    %474 = vmatpush2.msra.mxu0 0.0
    %475 = vmatprep.subr.mxu0 0.0
    %476 = vmatpush2.msra.mxu0 0.0
    %477 = vmatprep.subr.mxu0 0.0
    %478 = vmatpush2.msra.mxu0 0.0
    %479 = vmatprep.subr.mxu0 0.0
    %480 = vmatpush2.msra.mxu0 0.0
    %481 = vmatprep.subr.mxu0 0.0
    %482 = vmatpush2.msra.mxu0 0.0
    %483 = vmatprep.subr.mxu0 0.0
    %484 = vmatpush2.msra.mxu0 0.0
    %485 = vmatprep.subr.mxu0 0.0
    %486 = vmatpush2.msra.mxu0 0.0
    %487 = vmatprep.subr.mxu0 0.0
    %488 = vmatpush2.msra.mxu0 0.0
    %489 = vmatprep.mubr.f32.mxu0 0.0
    %490 = vmatmul.mubr.f32.gmra.mxu0 %v423
    %v491 = vpop.f32.mrf.mxu0
    %v492 = vadd.f32 %v420, %v491
    %v493 = vpop.f32.mrf.mxu0
    %494 = vdwg.mxu0
    %vm495 = vcmask 60416
    %496 = vst.msk [vmem:[#allocation2] sm:$0xf] %vm495, %v492
    %p497 = scmp.eq.s32.totalorder 0, 0
    // Predicated region
    $region42: #{tpu_custom_call.1} parent=1 // pred_check
      %p498 = pneg %p497
    $region43: #{tpu_custom_call.1} parent=1 // pred_check_branch
      %500 = sbr.rel (%p498) target = $region45
    $region44: #{tpu_custom_call.1} parent=1 // pred_region
      %v501 = vlaneseq
      %v502 = vshrl.u32 %v501, 7
      %v503 = vlaneseq
      %v504 = vand.u32 %v503, 127
      %vm505 = vcmp.le.s32.totalorder %v504, %v502
      %v506 = vld [vmem:[%s9] sm:$0xf]
      %v507 = vsel %vm505, %v506, 0.0
      %vm508 = vcmp.eq.s32.totalorder %v502, %v504
      %v509 = vsel %vm508, 1e-08, 0.0
      %vm510 = vcmask 31744
      %v512 = vsel %vm510, %v507, 0
      %514 = vmatprep.subr.mxu0 0.0
      %515 = vmatpush1.xpose.msra.mxu0 0.0
      %516 = vmatprep.subr.mxu0 0.0
      %517 = vmatpush1.xpose.msra.mxu0 0.0
      %518 = vmatprep.subr.mxu0 0.0
      %519 = vmatpush1.xpose.msra.mxu0 0.0
      %520 = vmatprep.subr.mxu0 0.0
      %521 = vmatpush1.xpose.msra.mxu0 0.0
      %522 = vmatprep.subr.mxu0 0.0
      %523 = vmatpush1.xpose.msra.mxu0 0.0
      %524 = vmatprep.subr.mxu0 0.0
      %525 = vmatpush1.xpose.msra.mxu0 0.0
      %526 = vmatprep.subr.mxu0 0.0
      %527 = vmatpush1.xpose.msra.mxu0 0.0
      %528 = vmatprep.subr.mxu0 0.0
      %529 = vmatpush1.xpose.msra.mxu0 0.0
      %530 = vmatprep.subr.mxu0 0.0
      %531 = vmatpush1.xpose.msra.mxu0 0.0
      %532 = vmatprep.subr.mxu0 0.0
      %533 = vmatpush1.xpose.msra.mxu0 0.0
      %534 = vmatprep.subr.mxu0 0.0
      %535 = vmatpush1.xpose.msra.mxu0 0.0
      %536 = vmatprep.subr.mxu0 0.0
      %537 = vmatpush1.xpose.msra.mxu0 0.0
      %538 = vmatprep.subr.mxu0 0.0
      %539 = vmatpush1.xpose.msra.mxu0 0.0
      %540 = vmatprep.subr.mxu0 0.0
      %541 = vmatpush1.xpose.msra.mxu0 0.0
      %542 = vmatprep.subr.mxu0 0.0
      %543 = vmatpush1.xpose.msra.mxu0 0.0
      %544 = vmatprep.subr.mxu0 0.0
      %545 = vmatpush1.xpose.msra.mxu0 %v512
      %546 = vmatprep.subr.mxu0 0.0
      %547 = vmatpush2.xpose.msra.mxu0 0.0
      %548 = vmatprep.subr.mxu0 0.0
      %549 = vmatpush2.xpose.msra.mxu0 0.0
      %550 = vmatprep.subr.mxu0 0.0
      %551 = vmatpush2.xpose.msra.mxu0 0.0
      %552 = vmatprep.subr.mxu0 0.0
      %553 = vmatpush2.xpose.msra.mxu0 0.0
      %554 = vmatprep.subr.mxu0 0.0
      %555 = vmatpush2.xpose.msra.mxu0 0.0
      %556 = vmatprep.subr.mxu0 0.0
      %557 = vmatpush2.xpose.msra.mxu0 0.0
      %558 = vmatprep.subr.mxu0 0.0
      %559 = vmatpush2.xpose.msra.mxu0 0.0
      %560 = vmatprep.subr.mxu0 0.0
      %561 = vmatpush2.xpose.msra.mxu0 0.0
      %562 = vmatprep.subr.mxu0 0.0
      %563 = vmatpush2.xpose.msra.mxu0 0.0
      %564 = vmatprep.subr.mxu0 0.0
      %565 = vmatpush2.xpose.msra.mxu0 0.0
      %566 = vmatprep.subr.mxu0 0.0
      %567 = vmatpush2.xpose.msra.mxu0 0.0
      %568 = vmatprep.subr.mxu0 0.0
      %569 = vmatpush2.xpose.msra.mxu0 0.0
      %570 = vmatprep.subr.mxu0 0.0
      %571 = vmatpush2.xpose.msra.mxu0 0.0
      %572 = vmatprep.subr.mxu0 0.0
      %573 = vmatpush2.xpose.msra.mxu0 0.0
      %574 = vmatprep.subr.mxu0 0.0
      %575 = vmatpush2.xpose.msra.mxu0 0.0
      %576 = vmatprep.subr.mxu0 0.0
      %577 = vmatpush2.xpose.msra.mxu0 0.0
      %578 = vmatprep.mubr.f32.mxu0 0.0
      %579 = vmatmul.mubr.f32.gmra.mxu0 %v512
      %v580 = vpop.f32.mrf.mxu0
      %v581 = vadd.f32 %v509, %v580
      %v582 = vpop.f32.mrf.mxu0
      %583 = vdwg.mxu0
      %v584 = vmax.f32 %v581, 0.0
      %vm585 = vcmask 27648
      %586 = vst.msk [vmem:[#allocation4] sm:$0xf] %vm585, %v584
    $region45: #{tpu_custom_call.1} parent=1 // pred_fallthru
      _
    // Predicated region
    $region46: #{tpu_custom_call.1} parent=1 // pred_check
      _
    $region47: #{tpu_custom_call.1} parent=1 // pred_check_branch
      %588 = sbr.rel (0) target = $region49
    $region48: #{tpu_custom_call.1} parent=1 // pred_region
      %s590 = ssub.s32 64, 64
      %591 = vsyncadd [#allocation3], %s590
      %s593 = sshll.u32 [#allocation2], 4
      %s594 = int_to_ptr.vmem [resolvable:$true] %s593
      %596 = dma.vmem_to_hbm [thread:$0]  %s594, 64, %s10, [#allocation3]
    $region49: #{tpu_custom_call.1} parent=1 // pred_fallthru
      _
    // Predicated region
    $region50: #{tpu_custom_call.1} parent=1 // pred_check
      _
    $region51: #{tpu_custom_call.1} parent=1 // pred_check_branch
      %598 = sbr.rel (0) target = $region53
    $region52: #{tpu_custom_call.1} parent=1 // pred_region
      %s600 = ssub.s32 64, 64
      %601 = vsyncadd [#allocation5], %s600
      %s603 = sshll.u32 [#allocation4], 4
      %s604 = int_to_ptr.vmem [resolvable:$true] %s603
      %606 = dma.vmem_to_hbm [thread:$0]  %s604, 64, %s11, [#allocation5]
    $region53: #{tpu_custom_call.1} parent=1 // pred_fallthru
      _
    // Predicated region
    $region54: #{tpu_custom_call.1} parent=1 // pred_check
      _
    $region55: #{tpu_custom_call.1} parent=1 // pred_check_branch
      %608 = sbr.rel (0) target = $region57
    $region56: #{tpu_custom_call.1} parent=1 // pred_region
      %609 = dma.done [#allocation3], 64
    $region57: #{tpu_custom_call.1} parent=1 // pred_fallthru
      _
    // Predicated region
    $region58: #{tpu_custom_call.1} parent=1 // pred_check
      _
    $region59: #{tpu_custom_call.1} parent=1 // pred_check_branch
      %611 = sbr.rel (0) target = $region61
    $region60: #{tpu_custom_call.1} parent=1 // pred_region
      %612 = dma.done [#allocation5], 64
    $region61: #{tpu_custom_call.1} parent=1 // pred_fallthru
      _
    %613 = vsyncpa [#allocation3], 1
    %614 = vsyncpa [#allocation5], 1

</llo_original>
